<compile_context>
chip_gen: v6e
topology: v6e:2x2x1
jax: 0.10.0
libtpu: 0.0.40
codegen_flags: <defaults>
</compile_context>

<pallas_src>
import jax
import jax.numpy as jnp
from jax.experimental import pallas as pl
from jax.experimental.pallas import tpu as pltpu

_ROW_GROUP = 8  # sublane count; rows of the flattened (S*B, C) view are grouped by 8


def _gate_kernel(gamma_ref, y_ref, w1_ref, w2_ref, slab_ref):
    # Squeeze-excite style gate folded into a single per-element scale:
    #   scale = 1 + gamma * (relu(mean_s(y) @ W1^T) @ W2^T)          -> (B, C)
    # TODO(synk): nn.Dropout(p=0.5) is identity in eval mode; training-mode
    # dropout would require pltpu.prng_* masking here.
    pooled = jnp.mean(y_ref[...].astype(jnp.float32), axis=0)                 # (B, C)    == AdaptiveAvgPool2d(1)
    h = jnp.dot(pooled, w1_ref[...], preferred_element_type=jnp.float32)      # (B, C//8) == linear1 (1x1 conv)
    h = jnp.maximum(h, 0.0)                                                   # ReLU
    ww = jnp.dot(h, w2_ref[...], preferred_element_type=jnp.float32)          # (B, C)    == linear2 (1x1 conv)
    scale = 1.0 + gamma_ref[0] * ww                                           # (B, C)
    # Replicate to a full sublane group (8, C): rows of the flattened (S*B, C)
    # view of x cycle through batch with period B, and 8 % B == 0.
    b = scale.shape[0]
    for r in range(_ROW_GROUP // b):
        slab_ref[pl.ds(r * b, b), :] = scale


def _scale_kernel(slab_ref, x_ref, o_ref):
    # x_ref: (S*B/8, 8, c_tile), slab_ref: (8, c_tile).  Pure elementwise scale.
    o_ref[...] = (x_ref[...].astype(jnp.float32) * slab_ref[...][None]).astype(o_ref.dtype)


def gap_forward(x, y, w1, w2, gamma):
    """x: (S_x, B, C), y: (S_y, B, C), w1: (C, C//8), w2: (C//8, C), gamma: (1,)."""
    s_x, b, c = x.shape
    rows = s_x * b
    assert rows % _ROW_GROUP == 0, "S_x * B must be a multiple of 8"
    assert _ROW_GROUP % b == 0, "batch must divide 8"
    assert c % 128 == 0, "channels must be a multiple of 128"

    # ---- one-shot gate kernel: (8, C) scale slab -----------------------------
    slab = pl.pallas_call(
        _gate_kernel,
        out_shape=jax.ShapeDtypeStruct((_ROW_GROUP, c), jnp.float32),
        in_specs=[
            pl.BlockSpec(memory_space=pltpu.MemorySpace.SMEM),   # gamma scalar
            pl.BlockSpec(memory_space=pltpu.MemorySpace.VMEM),   # y (fully resident, tiny)
            pl.BlockSpec(memory_space=pltpu.MemorySpace.VMEM),   # W1^T
            pl.BlockSpec(memory_space=pltpu.MemorySpace.VMEM),   # W2^T
        ],
        out_specs=pl.BlockSpec(memory_space=pltpu.MemorySpace.VMEM),
    )(gamma, y, w1, w2)

    # ---- streaming elementwise scale ----------------------------------------
    # (S, B, C) -> (S*B/8, 8, C): free contiguous reshape; blocks become
    # sublane/lane dense (4x denser vreg/VMEM occupancy than (B=2, C) slices).
    x3 = x.reshape(rows // _ROW_GROUP, _ROW_GROUP, c)

    # Two big channel blocks (~0.5 MiB each for the 484x2x256 case) instead of
    # 11 small seq tiles: per-step pipeline overhead is negligible, and the
    # "parallel" axis lets v7x megacore shard the HBM-bound loop over both TCs.
    lane_tile = c // 2 if (c // 2) % 128 == 0 else c
    grid = (c // lane_tile,)

    out = pl.pallas_call(
        _scale_kernel,
        out_shape=jax.ShapeDtypeStruct(x3.shape, x.dtype),
        grid_spec=pltpu.PrefetchScalarGridSpec(
            num_scalar_prefetch=0,
            grid=grid,
            in_specs=[
                pl.BlockSpec((_ROW_GROUP, lane_tile), lambda j: (0, j)),           # scale slab
                pl.BlockSpec((rows // _ROW_GROUP, _ROW_GROUP, lane_tile),
                             lambda j: (0, 0, j)),                                  # x channel slab
            ],
            out_specs=pl.BlockSpec((rows // _ROW_GROUP, _ROW_GROUP, lane_tile),
                                   lambda j: (0, 0, j)),
        ),
        compiler_params=pltpu.CompilerParams(
            # Gate is precomputed, so grid steps are independent -> parallel-safe.
            dimension_semantics=("parallel",),
        ),
    )(slab, x3)
    return out.reshape(s_x, b, c)


def gap_reference(x, y, w1, w2, gamma):
    pooled = jnp.mean(y.astype(jnp.float32), axis=0)   # (B, C)
    h = jnp.maximum(pooled @ w1, 0.0)                  # (B, C//8)
    ww = h @ w2                                        # (B, C)
    return (x + gamma[0] * ww[None, :, :] * x).astype(x.dtype)


if __name__ == "__main__":
    key = jax.random.PRNGKey(0)
    k1, k2, k3, k4 = jax.random.split(key, 4)

    B, C = 2, 256
    C8 = C // 8
    S_X = 22 * 22          # the module hardcodes a 22x22 spatial grid for x
    W_Y = 8
    S_Y = W_Y * W_Y        # y spatial must be a perfect square

    x = jax.random.normal(k1, (S_X, B, C), jnp.float32)
    y = jax.random.normal(k2, (S_Y, B, C), jnp.float32)

    # linear1: Conv2d(C, C//8, 1, bias=False) weight (C//8, C, 1, 1) -> stored transposed (C, C//8)
    w1 = (jax.random.normal(k3, (C8, C), jnp.float32) * 0.01).T
    # linear2: Conv2d(C//8, C, 1, bias=False) weight (C, C//8, 1, 1) -> stored transposed (C//8, C)
    w2 = (jax.random.normal(k4, (C, C8), jnp.float32) * 0.01).T
    # gamma is t.zeros(1) at init; use a deterministic nonzero value so the
    # gating path is actually exercised numerically (synthetic init).
    gamma = jnp.array([0.5], jnp.float32)

    out = jax.block_until_ready(gap_forward(x, y, w1, w2, gamma))
    ref = gap_reference(x, y, w1, w2, gamma)

    assert out.shape == (S_X, B, C)
    assert jnp.allclose(out, ref, atol=1e-5, rtol=1e-5)
    print("KERNEL_OK")
</pallas_src>

<mosaic_0001>
module attributes {stable_mosaic.version = 11 : i64} {
  func.func @_gate_kernel(%arg0: memref<1xf32, #tpu.memory_space<smem>>, %arg1: memref<64x2x256xf32, #tpu.memory_space<vmem>>, %arg2: memref<256x32xf32, #tpu.memory_space<vmem>>, %arg3: memref<32x256xf32, #tpu.memory_space<vmem>>, %arg4: memref<8x256xf32, #tpu.memory_space<vmem>>) attributes {dimension_semantics = [], scalar_prefetch = 0 : i64, scratch_operands = 0 : i64, tpu.core_type = #tpu.core_type<tc>} {
    %c0 = arith.constant 0 : index
    %c0_0 = arith.constant 0 : index
    %c0_1 = arith.constant 0 : index
    %0 = vector.load %arg1[%c0, %c0_0, %c0_1] : memref<64x2x256xf32, #tpu.memory_space<vmem>>, vector<64x2x256xf32>
    %cst = arith.constant dense<0.000000e+00> : vector<2x256xf32>
    %1 = vector.multi_reduction <add>, %0, %cst [0] : vector<64x2x256xf32> to vector<2x256xf32>
    %cst_2 = arith.constant 6.400000e+01 : f32
    %2 = vector.broadcast %cst_2 : f32 to vector<2x256xf32>
    %3 = arith.divf %1, %2 : vector<2x256xf32>
    %c0_3 = arith.constant 0 : index
    %c0_4 = arith.constant 0 : index
    %4 = vector.load %arg2[%c0_3, %c0_4] : memref<256x32xf32, #tpu.memory_space<vmem>>, vector<256x32xf32>
    %cst_5 = arith.constant dense<0.000000e+00> : vector<2x32xf32>
    %5 = tpu.matmul %3, %4, %cst_5 {dimension_numbers = #tpu.dot_dimension_numbers<[1], [0], [0], [1], [0, 0, 1, 1], [], []>} : vector<2x256xf32>, vector<256x32xf32>, vector<2x32xf32> -> vector<2x32xf32>
    %cst_6 = arith.constant 0.000000e+00 : f32
    %6 = vector.broadcast %cst_6 : f32 to vector<2x32xf32>
    %7 = arith.maximumf %5, %6 : vector<2x32xf32>
    %c0_7 = arith.constant 0 : index
    %c0_8 = arith.constant 0 : index
    %8 = vector.load %arg3[%c0_7, %c0_8] : memref<32x256xf32, #tpu.memory_space<vmem>>, vector<32x256xf32>
    %cst_9 = arith.constant dense<0.000000e+00> : vector<2x256xf32>
    %9 = tpu.matmul %7, %8, %cst_9 {dimension_numbers = #tpu.dot_dimension_numbers<[1], [0], [0], [1], [0, 0, 1, 1], [], []>} : vector<2x32xf32>, vector<32x256xf32>, vector<2x256xf32> -> vector<2x256xf32>
    %c0_10 = arith.constant 0 : index
    %10 = memref.load %arg0[%c0_10] : memref<1xf32, #tpu.memory_space<smem>>
    %11 = vector.broadcast %10 : f32 to vector<2x256xf32>
    %12 = arith.mulf %11, %9 : vector<2x256xf32>
    %cst_11 = arith.constant 1.000000e+00 : f32
    %13 = vector.broadcast %cst_11 : f32 to vector<2x256xf32>
    %14 = arith.addf %13, %12 : vector<2x256xf32>
    %c0_12 = arith.constant 0 : index
    %c0_13 = arith.constant 0 : index
    %15 = vector.load %arg4[%c0_12, %c0_13] : memref<8x256xf32, #tpu.memory_space<vmem>>, vector<2x256xf32>
    tpu.vector_store %arg4[%c0_12, %c0_13], %14 {strides = array<i32>} : memref<8x256xf32, #tpu.memory_space<vmem>>, vector<2x256xf32>,
    %c2 = arith.constant 2 : index
    %c0_14 = arith.constant 0 : index
    %16 = vector.load %arg4[%c2, %c0_14] : memref<8x256xf32, #tpu.memory_space<vmem>>, vector<2x256xf32>
    tpu.vector_store %arg4[%c2, %c0_14], %14 {strides = array<i32>} : memref<8x256xf32, #tpu.memory_space<vmem>>, vector<2x256xf32>,
    %c4 = arith.constant 4 : index
    %c0_15 = arith.constant 0 : index
    %17 = vector.load %arg4[%c4, %c0_15] : memref<8x256xf32, #tpu.memory_space<vmem>>, vector<2x256xf32>
    tpu.vector_store %arg4[%c4, %c0_15], %14 {strides = array<i32>} : memref<8x256xf32, #tpu.memory_space<vmem>>, vector<2x256xf32>,
    %c6 = arith.constant 6 : index
    %c0_16 = arith.constant 0 : index
    %18 = vector.load %arg4[%c6, %c0_16] : memref<8x256xf32, #tpu.memory_space<vmem>>, vector<2x256xf32>
    tpu.vector_store %arg4[%c6, %c0_16], %14 {strides = array<i32>} : memref<8x256xf32, #tpu.memory_space<vmem>>, vector<2x256xf32>,
    return
  }
}

</mosaic_0001>

<llo_original>
// kernel: tpu_custom_call.1
$region0: #{tpu_custom_call.1}
  #allocation0 [shape = 'u32[]', space=smem, size = 0x4, offset = 0x4, fixed_abs, tag = 'smem constant byte address 0x4 - core index']
  #allocation1 [shape = 'u32[144,128]{1,0:T(1,128)}', space=vmem, size = 0x12000, scoped, tag = 'internal scratch']
  #allocation2 [shape = 'f32[1]{0:T(128)S(6)}', space=smem, size = 0x200, scoped, tag = 'scoped memory for tpu_custom_call.1']
  %s0 = inlined_call_operand.<no memory space> [shape: f32[1], index: 0, kind: input, shape index: {}]
  %s1 = inlined_call_operand.vmem [shape: f32[64,2,256], index: 1, kind: input, shape index: {}]
  %s2 = inlined_call_operand.vmem [shape: f32[256,32], index: 2, kind: input, shape index: {}]
  %s3 = inlined_call_operand.vmem [shape: f32[32,256], index: 3, kind: input, shape index: {}]
  %s4 = inlined_call_operand.hbm [shape: f32[8,256], index: 4, kind: output, shape index: {}]
  %s5 = sld [smem:[#allocation0]]
  $region26: #{tpu_custom_call.1} parent=0
    _
  %s7 = ssub.s32 1, %s5
  %s8 = scalar_select 0, %s7, %s5
  %9 = sst [smem:[#allocation2]] %s0
  $region1: #{tpu_custom_call.1} parent=0
    #allocation3 [shape = 'u8[8192]{0}', space=vmem, size = 0x2000, scoped, tag = 'output window, operand 0, single buffered']
    #allocation4 [shape = 's32[1]{0}', space=sflag, size = 0x4, scoped, tag = 'scoped memory for tpu_custom_call.1']
    %10 = vsyncpa [#allocation4], 0
    // Predicated region
    $region2: #{tpu_custom_call.1} parent=1 // pred_check
      _
    $region3: #{tpu_custom_call.1} parent=1 // pred_check_branch
      %12 = sbr.rel (0) target = $region5
    $region4: #{tpu_custom_call.1} parent=1 // pred_region
      _
    $region5: #{tpu_custom_call.1} parent=1 // pred_fallthru
      _
    // Predicated region
    $region6: #{tpu_custom_call.1} parent=1 // pred_check
      _
    $region7: #{tpu_custom_call.1} parent=1 // pred_check_branch
      %14 = sbr.rel (0) target = $region9
    $region8: #{tpu_custom_call.1} parent=1 // pred_region
      _
    $region9: #{tpu_custom_call.1} parent=1 // pred_fallthru
      _
    // Predicated region
    $region10: #{tpu_custom_call.1} parent=1 // pred_check
      _
    $region11: #{tpu_custom_call.1} parent=1 // pred_check_branch
      %16 = sbr.rel (0) target = $region13
    $region12: #{tpu_custom_call.1} parent=1 // pred_region
      _
    $region13: #{tpu_custom_call.1} parent=1 // pred_fallthru
      _
    // Predicated region
    $region14: #{tpu_custom_call.1} parent=1 // pred_check
      _
    $region15: #{tpu_custom_call.1} parent=1 // pred_check_branch
      %18 = sbr.rel (0) target = $region17
    $region16: #{tpu_custom_call.1} parent=1 // pred_region
      _
    $region17: #{tpu_custom_call.1} parent=1 // pred_fallthru
      _
    %v19 = vld [vmem:[%s1] sm:$0xf]
    %v20 = vld [vmem:[%s1 + $0x4] sm:$0xf]
    %v21 = vld [vmem:[%s1 + $0x8] sm:$0xf]
    %v22 = vld [vmem:[%s1 + $0xc] sm:$0xf]
    %v23 = vld [vmem:[%s1 + $0x10] sm:$0xf]
    %v24 = vld [vmem:[%s1 + $0x14] sm:$0xf]
    %v25 = vld [vmem:[%s1 + $0x18] sm:$0xf]
    %v26 = vld [vmem:[%s1 + $0x1c] sm:$0xf]
    %v27 = vld [vmem:[%s1 + $0x20] sm:$0xf]
    %v28 = vld [vmem:[%s1 + $0x24] sm:$0xf]
    %v29 = vld [vmem:[%s1 + $0x28] sm:$0xf]
    %v30 = vld [vmem:[%s1 + $0x2c] sm:$0xf]
    %v31 = vld [vmem:[%s1 + $0x30] sm:$0xf]
    %v32 = vld [vmem:[%s1 + $0x34] sm:$0xf]
    %v33 = vld [vmem:[%s1 + $0x38] sm:$0xf]
    %v34 = vld [vmem:[%s1 + $0x3c] sm:$0xf]
    %v35 = vld [vmem:[%s1 + $0x40] sm:$0xf]
    %v36 = vld [vmem:[%s1 + $0x44] sm:$0xf]
    %v37 = vld [vmem:[%s1 + $0x48] sm:$0xf]
    %v38 = vld [vmem:[%s1 + $0x4c] sm:$0xf]
    %v39 = vld [vmem:[%s1 + $0x50] sm:$0xf]
    %v40 = vld [vmem:[%s1 + $0x54] sm:$0xf]
    %v41 = vld [vmem:[%s1 + $0x58] sm:$0xf]
    %v42 = vld [vmem:[%s1 + $0x5c] sm:$0xf]
    %v43 = vld [vmem:[%s1 + $0x60] sm:$0xf]
    %v44 = vld [vmem:[%s1 + $0x64] sm:$0xf]
    %v45 = vld [vmem:[%s1 + $0x68] sm:$0xf]
    %v46 = vld [vmem:[%s1 + $0x6c] sm:$0xf]
    %v47 = vld [vmem:[%s1 + $0x70] sm:$0xf]
    %v48 = vld [vmem:[%s1 + $0x74] sm:$0xf]
    %v49 = vld [vmem:[%s1 + $0x78] sm:$0xf]
    %v50 = vld [vmem:[%s1 + $0x7c] sm:$0xf]
    %v51 = vld [vmem:[%s1 + $0x80] sm:$0xf]
    %v52 = vld [vmem:[%s1 + $0x84] sm:$0xf]
    %v53 = vld [vmem:[%s1 + $0x88] sm:$0xf]
    %v54 = vld [vmem:[%s1 + $0x8c] sm:$0xf]
    %v55 = vld [vmem:[%s1 + $0x90] sm:$0xf]
    %v56 = vld [vmem:[%s1 + $0x94] sm:$0xf]
    %v57 = vld [vmem:[%s1 + $0x98] sm:$0xf]
    %v58 = vld [vmem:[%s1 + $0x9c] sm:$0xf]
    %v59 = vld [vmem:[%s1 + $0xa0] sm:$0xf]
    %v60 = vld [vmem:[%s1 + $0xa4] sm:$0xf]
    %v61 = vld [vmem:[%s1 + $0xa8] sm:$0xf]
    %v62 = vld [vmem:[%s1 + $0xac] sm:$0xf]
    %v63 = vld [vmem:[%s1 + $0xb0] sm:$0xf]
    %v64 = vld [vmem:[%s1 + $0xb4] sm:$0xf]
    %v65 = vld [vmem:[%s1 + $0xb8] sm:$0xf]
    %v66 = vld [vmem:[%s1 + $0xbc] sm:$0xf]
    %v67 = vld [vmem:[%s1 + $0xc0] sm:$0xf]
    %v68 = vld [vmem:[%s1 + $0xc4] sm:$0xf]
    %v69 = vld [vmem:[%s1 + $0xc8] sm:$0xf]
    %v70 = vld [vmem:[%s1 + $0xcc] sm:$0xf]
    %v71 = vld [vmem:[%s1 + $0xd0] sm:$0xf]
    %v72 = vld [vmem:[%s1 + $0xd4] sm:$0xf]
    %v73 = vld [vmem:[%s1 + $0xd8] sm:$0xf]
    %v74 = vld [vmem:[%s1 + $0xdc] sm:$0xf]
    %v75 = vld [vmem:[%s1 + $0xe0] sm:$0xf]
    %v76 = vld [vmem:[%s1 + $0xe4] sm:$0xf]
    %v77 = vld [vmem:[%s1 + $0xe8] sm:$0xf]
    %v78 = vld [vmem:[%s1 + $0xec] sm:$0xf]
    %v79 = vld [vmem:[%s1 + $0xf0] sm:$0xf]
    %v80 = vld [vmem:[%s1 + $0xf4] sm:$0xf]
    %v81 = vld [vmem:[%s1 + $0xf8] sm:$0xf]
    %v82 = vld [vmem:[%s1 + $0xfc] sm:$0xf]
    %v148 = vunpack.c.l.s4 1983009808
    %v149 = vunpack.c.0.s8 %v148
    %v150 = vlaneseq
    %v151 = vshrl.u32 %v150, 7
    %v152 = vsub.s32 %v149, %v151
    %v153 = vrot.slane %v19, %v152
    %v154 = vcombine.high %v153, %v153
    %v156 = vunpack.c.l.s4 1983009808
    %v157 = vunpack.c.0.s8 %v156
    %v158 = vlaneseq
    %v159 = vshrl.u32 %v158, 7
    %v160 = vsub.s32 %v157, %v159
    %v161 = vrot.slane %v20, %v160
    %v162 = vcombine.high %v161, %v161
    %v164 = vunpack.c.l.s4 1983009808
    %v165 = vunpack.c.0.s8 %v164
    %v166 = vlaneseq
    %v167 = vshrl.u32 %v166, 7
    %v168 = vsub.s32 %v165, %v167
    %v169 = vrot.slane %v21, %v168
    %v170 = vcombine.high %v169, %v169
    %v172 = vunpack.c.l.s4 1983009808
    %v173 = vunpack.c.0.s8 %v172
    %v174 = vlaneseq
    %v175 = vshrl.u32 %v174, 7
    %v176 = vsub.s32 %v173, %v175
    %v177 = vrot.slane %v22, %v176
    %v178 = vcombine.high %v177, %v177
    %v180 = vunpack.c.l.s4 1983009808
    %v181 = vunpack.c.0.s8 %v180
    %v182 = vlaneseq
    %v183 = vshrl.u32 %v182, 7
    %v184 = vsub.s32 %v181, %v183
    %v185 = vrot.slane %v23, %v184
    %v186 = vcombine.high %v185, %v185
    %v188 = vunpack.c.l.s4 1983009808
    %v189 = vunpack.c.0.s8 %v188
    %v190 = vlaneseq
    %v191 = vshrl.u32 %v190, 7
    %v192 = vsub.s32 %v189, %v191
    %v193 = vrot.slane %v24, %v192
    %v194 = vcombine.high %v193, %v193
    %v196 = vunpack.c.l.s4 1983009808
    %v197 = vunpack.c.0.s8 %v196
    %v198 = vlaneseq
    %v199 = vshrl.u32 %v198, 7
    %v200 = vsub.s32 %v197, %v199
    %v201 = vrot.slane %v25, %v200
    %v202 = vcombine.high %v201, %v201
    %v204 = vunpack.c.l.s4 1983009808
    %v205 = vunpack.c.0.s8 %v204
    %v206 = vlaneseq
    %v207 = vshrl.u32 %v206, 7
    %v208 = vsub.s32 %v205, %v207
    %v209 = vrot.slane %v26, %v208
    %v210 = vcombine.high %v209, %v209
    %v212 = vunpack.c.l.s4 1983009808
    %v213 = vunpack.c.0.s8 %v212
    %v214 = vlaneseq
    %v215 = vshrl.u32 %v214, 7
    %v216 = vsub.s32 %v213, %v215
    %v217 = vrot.slane %v27, %v216
    %v218 = vcombine.high %v217, %v217
    %v220 = vunpack.c.l.s4 1983009808
    %v221 = vunpack.c.0.s8 %v220
    %v222 = vlaneseq
    %v223 = vshrl.u32 %v222, 7
    %v224 = vsub.s32 %v221, %v223
    %v225 = vrot.slane %v28, %v224
    %v226 = vcombine.high %v225, %v225
    %v228 = vunpack.c.l.s4 1983009808
    %v229 = vunpack.c.0.s8 %v228
    %v230 = vlaneseq
    %v231 = vshrl.u32 %v230, 7
    %v232 = vsub.s32 %v229, %v231
    %v233 = vrot.slane %v29, %v232
    %v234 = vcombine.high %v233, %v233
    %v236 = vunpack.c.l.s4 1983009808
    %v237 = vunpack.c.0.s8 %v236
    %v238 = vlaneseq
    %v239 = vshrl.u32 %v238, 7
    %v240 = vsub.s32 %v237, %v239
    %v241 = vrot.slane %v30, %v240
    %v242 = vcombine.high %v241, %v241
    %v244 = vunpack.c.l.s4 1983009808
    %v245 = vunpack.c.0.s8 %v244
    %v246 = vlaneseq
    %v247 = vshrl.u32 %v246, 7
    %v248 = vsub.s32 %v245, %v247
    %v249 = vrot.slane %v31, %v248
    %v250 = vcombine.high %v249, %v249
    %v252 = vunpack.c.l.s4 1983009808
    %v253 = vunpack.c.0.s8 %v252
    %v254 = vlaneseq
    %v255 = vshrl.u32 %v254, 7
    %v256 = vsub.s32 %v253, %v255
    %v257 = vrot.slane %v32, %v256
    %v258 = vcombine.high %v257, %v257
    %v260 = vunpack.c.l.s4 1983009808
    %v261 = vunpack.c.0.s8 %v260
    %v262 = vlaneseq
    %v263 = vshrl.u32 %v262, 7
    %v264 = vsub.s32 %v261, %v263
    %v265 = vrot.slane %v33, %v264
    %v266 = vcombine.high %v265, %v265
    %v268 = vunpack.c.l.s4 1983009808
    %v269 = vunpack.c.0.s8 %v268
    %v270 = vlaneseq
    %v271 = vshrl.u32 %v270, 7
    %v272 = vsub.s32 %v269, %v271
    %v273 = vrot.slane %v34, %v272
    %v274 = vcombine.high %v273, %v273
    %v276 = vunpack.c.l.s4 1983009808
    %v277 = vunpack.c.0.s8 %v276
    %v278 = vlaneseq
    %v279 = vshrl.u32 %v278, 7
    %v280 = vsub.s32 %v277, %v279
    %v281 = vrot.slane %v35, %v280
    %v282 = vcombine.high %v281, %v281
    %v284 = vunpack.c.l.s4 1983009808
    %v285 = vunpack.c.0.s8 %v284
    %v286 = vlaneseq
    %v287 = vshrl.u32 %v286, 7
    %v288 = vsub.s32 %v285, %v287
    %v289 = vrot.slane %v36, %v288
    %v290 = vcombine.high %v289, %v289
    %v292 = vunpack.c.l.s4 1983009808
    %v293 = vunpack.c.0.s8 %v292
    %v294 = vlaneseq
    %v295 = vshrl.u32 %v294, 7
    %v296 = vsub.s32 %v293, %v295
    %v297 = vrot.slane %v37, %v296
    %v298 = vcombine.high %v297, %v297
    %v300 = vunpack.c.l.s4 1983009808
    %v301 = vunpack.c.0.s8 %v300
    %v302 = vlaneseq
    %v303 = vshrl.u32 %v302, 7
    %v304 = vsub.s32 %v301, %v303
    %v305 = vrot.slane %v38, %v304
    %v306 = vcombine.high %v305, %v305
    %v308 = vunpack.c.l.s4 1983009808
    %v309 = vunpack.c.0.s8 %v308
    %v310 = vlaneseq
    %v311 = vshrl.u32 %v310, 7
    %v312 = vsub.s32 %v309, %v311
    %v313 = vrot.slane %v39, %v312
    %v314 = vcombine.high %v313, %v313
    %v316 = vunpack.c.l.s4 1983009808
    %v317 = vunpack.c.0.s8 %v316
    %v318 = vlaneseq
    %v319 = vshrl.u32 %v318, 7
    %v320 = vsub.s32 %v317, %v319
    %v321 = vrot.slane %v40, %v320
    %v322 = vcombine.high %v321, %v321
    %v324 = vunpack.c.l.s4 1983009808
    %v325 = vunpack.c.0.s8 %v324
    %v326 = vlaneseq
    %v327 = vshrl.u32 %v326, 7
    %v328 = vsub.s32 %v325, %v327
    %v329 = vrot.slane %v41, %v328
    %v330 = vcombine.high %v329, %v329
    %v332 = vunpack.c.l.s4 1983009808
    %v333 = vunpack.c.0.s8 %v332
    %v334 = vlaneseq
    %v335 = vshrl.u32 %v334, 7
    %v336 = vsub.s32 %v333, %v335
    %v337 = vrot.slane %v42, %v336
    %v338 = vcombine.high %v337, %v337
    %v340 = vunpack.c.l.s4 1983009808
    %v341 = vunpack.c.0.s8 %v340
    %v342 = vlaneseq
    %v343 = vshrl.u32 %v342, 7
    %v344 = vsub.s32 %v341, %v343
    %v345 = vrot.slane %v43, %v344
    %v346 = vcombine.high %v345, %v345
    %v348 = vunpack.c.l.s4 1983009808
    %v349 = vunpack.c.0.s8 %v348
    %v350 = vlaneseq
    %v351 = vshrl.u32 %v350, 7
    %v352 = vsub.s32 %v349, %v351
    %v353 = vrot.slane %v44, %v352
    %v354 = vcombine.high %v353, %v353
    %v356 = vunpack.c.l.s4 1983009808
    %v357 = vunpack.c.0.s8 %v356
    %v358 = vlaneseq
    %v359 = vshrl.u32 %v358, 7
    %v360 = vsub.s32 %v357, %v359
    %v361 = vrot.slane %v45, %v360
    %v362 = vcombine.high %v361, %v361
    %v364 = vunpack.c.l.s4 1983009808
    %v365 = vunpack.c.0.s8 %v364
    %v366 = vlaneseq
    %v367 = vshrl.u32 %v366, 7
    %v368 = vsub.s32 %v365, %v367
    %v369 = vrot.slane %v46, %v368
    %v370 = vcombine.high %v369, %v369
    %v372 = vunpack.c.l.s4 1983009808
    %v373 = vunpack.c.0.s8 %v372
    %v374 = vlaneseq
    %v375 = vshrl.u32 %v374, 7
    %v376 = vsub.s32 %v373, %v375
    %v377 = vrot.slane %v47, %v376
    %v378 = vcombine.high %v377, %v377
    %v380 = vunpack.c.l.s4 1983009808
    %v381 = vunpack.c.0.s8 %v380
    %v382 = vlaneseq
    %v383 = vshrl.u32 %v382, 7
    %v384 = vsub.s32 %v381, %v383
    %v385 = vrot.slane %v48, %v384
    %v386 = vcombine.high %v385, %v385
    %v388 = vunpack.c.l.s4 1983009808
    %v389 = vunpack.c.0.s8 %v388
    %v390 = vlaneseq
    %v391 = vshrl.u32 %v390, 7
    %v392 = vsub.s32 %v389, %v391
    %v393 = vrot.slane %v49, %v392
    %v394 = vcombine.high %v393, %v393
    %v396 = vunpack.c.l.s4 1983009808
    %v397 = vunpack.c.0.s8 %v396
    %v398 = vlaneseq
    %v399 = vshrl.u32 %v398, 7
    %v400 = vsub.s32 %v397, %v399
    %v401 = vrot.slane %v50, %v400
    %v402 = vcombine.high %v401, %v401
    %v404 = vunpack.c.l.s4 1983009808
    %v405 = vunpack.c.0.s8 %v404
    %v406 = vlaneseq
    %v407 = vshrl.u32 %v406, 7
    %v408 = vsub.s32 %v405, %v407
    %v409 = vrot.slane %v51, %v408
    %v410 = vcombine.high %v409, %v409
    %v412 = vunpack.c.l.s4 1983009808
    %v413 = vunpack.c.0.s8 %v412
    %v414 = vlaneseq
    %v415 = vshrl.u32 %v414, 7
    %v416 = vsub.s32 %v413, %v415
    %v417 = vrot.slane %v52, %v416
    %v418 = vcombine.high %v417, %v417
    %v420 = vunpack.c.l.s4 1983009808
    %v421 = vunpack.c.0.s8 %v420
    %v422 = vlaneseq
    %v423 = vshrl.u32 %v422, 7
    %v424 = vsub.s32 %v421, %v423
    %v425 = vrot.slane %v53, %v424
    %v426 = vcombine.high %v425, %v425
    %v428 = vunpack.c.l.s4 1983009808
    %v429 = vunpack.c.0.s8 %v428
    %v430 = vlaneseq
    %v431 = vshrl.u32 %v430, 7
    %v432 = vsub.s32 %v429, %v431
    %v433 = vrot.slane %v54, %v432
    %v434 = vcombine.high %v433, %v433
    %v436 = vunpack.c.l.s4 1983009808
    %v437 = vunpack.c.0.s8 %v436
    %v438 = vlaneseq
    %v439 = vshrl.u32 %v438, 7
    %v440 = vsub.s32 %v437, %v439
    %v441 = vrot.slane %v55, %v440
    %v442 = vcombine.high %v441, %v441
    %v444 = vunpack.c.l.s4 1983009808
    %v445 = vunpack.c.0.s8 %v444
    %v446 = vlaneseq
    %v447 = vshrl.u32 %v446, 7
    %v448 = vsub.s32 %v445, %v447
    %v449 = vrot.slane %v56, %v448
    %v450 = vcombine.high %v449, %v449
    %v452 = vunpack.c.l.s4 1983009808
    %v453 = vunpack.c.0.s8 %v452
    %v454 = vlaneseq
    %v455 = vshrl.u32 %v454, 7
    %v456 = vsub.s32 %v453, %v455
    %v457 = vrot.slane %v57, %v456
    %v458 = vcombine.high %v457, %v457
    %v460 = vunpack.c.l.s4 1983009808
    %v461 = vunpack.c.0.s8 %v460
    %v462 = vlaneseq
    %v463 = vshrl.u32 %v462, 7
    %v464 = vsub.s32 %v461, %v463
    %v465 = vrot.slane %v58, %v464
    %v466 = vcombine.high %v465, %v465
    %v468 = vunpack.c.l.s4 1983009808
    %v469 = vunpack.c.0.s8 %v468
    %v470 = vlaneseq
    %v471 = vshrl.u32 %v470, 7
    %v472 = vsub.s32 %v469, %v471
    %v473 = vrot.slane %v59, %v472
    %v474 = vcombine.high %v473, %v473
    %v476 = vunpack.c.l.s4 1983009808
    %v477 = vunpack.c.0.s8 %v476
    %v478 = vlaneseq
    %v479 = vshrl.u32 %v478, 7
    %v480 = vsub.s32 %v477, %v479
    %v481 = vrot.slane %v60, %v480
    %v482 = vcombine.high %v481, %v481
    %v484 = vunpack.c.l.s4 1983009808
    %v485 = vunpack.c.0.s8 %v484
    %v486 = vlaneseq
    %v487 = vshrl.u32 %v486, 7
    %v488 = vsub.s32 %v485, %v487
    %v489 = vrot.slane %v61, %v488
    %v490 = vcombine.high %v489, %v489
    %v492 = vunpack.c.l.s4 1983009808
    %v493 = vunpack.c.0.s8 %v492
    %v494 = vlaneseq
    %v495 = vshrl.u32 %v494, 7
    %v496 = vsub.s32 %v493, %v495
    %v497 = vrot.slane %v62, %v496
    %v498 = vcombine.high %v497, %v497
    %v500 = vunpack.c.l.s4 1983009808
    %v501 = vunpack.c.0.s8 %v500
    %v502 = vlaneseq
    %v503 = vshrl.u32 %v502, 7
    %v504 = vsub.s32 %v501, %v503
    %v505 = vrot.slane %v63, %v504
    %v506 = vcombine.high %v505, %v505
    %v508 = vunpack.c.l.s4 1983009808
    %v509 = vunpack.c.0.s8 %v508
    %v510 = vlaneseq
    %v511 = vshrl.u32 %v510, 7
    %v512 = vsub.s32 %v509, %v511
    %v513 = vrot.slane %v64, %v512
    %v514 = vcombine.high %v513, %v513
    %v516 = vunpack.c.l.s4 1983009808
    %v517 = vunpack.c.0.s8 %v516
    %v518 = vlaneseq
    %v519 = vshrl.u32 %v518, 7
    %v520 = vsub.s32 %v517, %v519
    %v521 = vrot.slane %v65, %v520
    %v522 = vcombine.high %v521, %v521
    %v524 = vunpack.c.l.s4 1983009808
    %v525 = vunpack.c.0.s8 %v524
    %v526 = vlaneseq
    %v527 = vshrl.u32 %v526, 7
    %v528 = vsub.s32 %v525, %v527
    %v529 = vrot.slane %v66, %v528
    %v530 = vcombine.high %v529, %v529
    %v532 = vunpack.c.l.s4 1983009808
    %v533 = vunpack.c.0.s8 %v532
    %v534 = vlaneseq
    %v535 = vshrl.u32 %v534, 7
    %v536 = vsub.s32 %v533, %v535
    %v537 = vrot.slane %v67, %v536
    %v538 = vcombine.high %v537, %v537
    %v540 = vunpack.c.l.s4 1983009808
    %v541 = vunpack.c.0.s8 %v540
    %v542 = vlaneseq
    %v543 = vshrl.u32 %v542, 7
    %v544 = vsub.s32 %v541, %v543
    %v545 = vrot.slane %v68, %v544
    %v546 = vcombine.high %v545, %v545
    %v548 = vunpack.c.l.s4 1983009808
    %v549 = vunpack.c.0.s8 %v548
    %v550 = vlaneseq
    %v551 = vshrl.u32 %v550, 7
    %v552 = vsub.s32 %v549, %v551
    %v553 = vrot.slane %v69, %v552
    %v554 = vcombine.high %v553, %v553
    %v556 = vunpack.c.l.s4 1983009808
    %v557 = vunpack.c.0.s8 %v556
    %v558 = vlaneseq
    %v559 = vshrl.u32 %v558, 7
    %v560 = vsub.s32 %v557, %v559
    %v561 = vrot.slane %v70, %v560
    %v562 = vcombine.high %v561, %v561
    %v564 = vunpack.c.l.s4 1983009808
    %v565 = vunpack.c.0.s8 %v564
    %v566 = vlaneseq
    %v567 = vshrl.u32 %v566, 7
    %v568 = vsub.s32 %v565, %v567
    %v569 = vrot.slane %v71, %v568
    %v570 = vcombine.high %v569, %v569
    %v572 = vunpack.c.l.s4 1983009808
    %v573 = vunpack.c.0.s8 %v572
    %v574 = vlaneseq
    %v575 = vshrl.u32 %v574, 7
    %v576 = vsub.s32 %v573, %v575
    %v577 = vrot.slane %v72, %v576
    %v578 = vcombine.high %v577, %v577
    %v580 = vunpack.c.l.s4 1983009808
    %v581 = vunpack.c.0.s8 %v580
    %v582 = vlaneseq
    %v583 = vshrl.u32 %v582, 7
    %v584 = vsub.s32 %v581, %v583
    %v585 = vrot.slane %v73, %v584
    %v586 = vcombine.high %v585, %v585
    %v588 = vunpack.c.l.s4 1983009808
    %v589 = vunpack.c.0.s8 %v588
    %v590 = vlaneseq
    %v591 = vshrl.u32 %v590, 7
    %v592 = vsub.s32 %v589, %v591
    %v593 = vrot.slane %v74, %v592
    %v594 = vcombine.high %v593, %v593
    %v596 = vunpack.c.l.s4 1983009808
    %v597 = vunpack.c.0.s8 %v596
    %v598 = vlaneseq
    %v599 = vshrl.u32 %v598, 7
    %v600 = vsub.s32 %v597, %v599
    %v601 = vrot.slane %v75, %v600
    %v602 = vcombine.high %v601, %v601
    %v604 = vunpack.c.l.s4 1983009808
    %v605 = vunpack.c.0.s8 %v604
    %v606 = vlaneseq
    %v607 = vshrl.u32 %v606, 7
    %v608 = vsub.s32 %v605, %v607
    %v609 = vrot.slane %v76, %v608
    %v610 = vcombine.high %v609, %v609
    %v612 = vunpack.c.l.s4 1983009808
    %v613 = vunpack.c.0.s8 %v612
    %v614 = vlaneseq
    %v615 = vshrl.u32 %v614, 7
    %v616 = vsub.s32 %v613, %v615
    %v617 = vrot.slane %v77, %v616
    %v618 = vcombine.high %v617, %v617
    %v620 = vunpack.c.l.s4 1983009808
    %v621 = vunpack.c.0.s8 %v620
    %v622 = vlaneseq
    %v623 = vshrl.u32 %v622, 7
    %v624 = vsub.s32 %v621, %v623
    %v625 = vrot.slane %v78, %v624
    %v626 = vcombine.high %v625, %v625
    %v628 = vunpack.c.l.s4 1983009808
    %v629 = vunpack.c.0.s8 %v628
    %v630 = vlaneseq
    %v631 = vshrl.u32 %v630, 7
    %v632 = vsub.s32 %v629, %v631
    %v633 = vrot.slane %v79, %v632
    %v634 = vcombine.high %v633, %v633
    %v636 = vunpack.c.l.s4 1983009808
    %v637 = vunpack.c.0.s8 %v636
    %v638 = vlaneseq
    %v639 = vshrl.u32 %v638, 7
    %v640 = vsub.s32 %v637, %v639
    %v641 = vrot.slane %v80, %v640
    %v642 = vcombine.high %v641, %v641
    %v644 = vunpack.c.l.s4 1983009808
    %v645 = vunpack.c.0.s8 %v644
    %v646 = vlaneseq
    %v647 = vshrl.u32 %v646, 7
    %v648 = vsub.s32 %v645, %v647
    %v649 = vrot.slane %v81, %v648
    %v650 = vcombine.high %v649, %v649
    %v652 = vunpack.c.l.s4 1983009808
    %v653 = vunpack.c.0.s8 %v652
    %v654 = vlaneseq
    %v655 = vshrl.u32 %v654, 7
    %v656 = vsub.s32 %v653, %v655
    %v657 = vrot.slane %v82, %v656
    %v658 = vcombine.high %v657, %v657
    %vm787 = vcmask 1041408
    %v788 = vsel %vm787, %v153, 0.0
    %v789 = vsel %vm787, %v161, 0.0
    %v790 = vadd.f32 %v788, %v789
    %v791 = vsel %vm787, %v169, 0.0
    %v792 = vadd.f32 %v790, %v791
    %v793 = vsel %vm787, %v177, 0.0
    %v794 = vadd.f32 %v792, %v793
    %v795 = vsel %vm787, %v185, 0.0
    %v796 = vadd.f32 %v794, %v795
    %v797 = vsel %vm787, %v193, 0.0
    %v798 = vadd.f32 %v796, %v797
    %v799 = vsel %vm787, %v201, 0.0
    %v800 = vadd.f32 %v798, %v799
    %v801 = vsel %vm787, %v209, 0.0
    %v802 = vadd.f32 %v800, %v801
    %v803 = vsel %vm787, %v217, 0.0
    %v804 = vadd.f32 %v802, %v803
    %v805 = vsel %vm787, %v225, 0.0
    %v806 = vadd.f32 %v804, %v805
    %v807 = vsel %vm787, %v233, 0.0
    %v808 = vadd.f32 %v806, %v807
    %v809 = vsel %vm787, %v241, 0.0
    %v810 = vadd.f32 %v808, %v809
    %v811 = vsel %vm787, %v249, 0.0
    %v812 = vadd.f32 %v810, %v811
    %v813 = vsel %vm787, %v257, 0.0
    %v814 = vadd.f32 %v812, %v813
    %v815 = vsel %vm787, %v265, 0.0
    %v816 = vadd.f32 %v814, %v815
    %v817 = vsel %vm787, %v273, 0.0
    %v818 = vadd.f32 %v816, %v817
    %v819 = vsel %vm787, %v281, 0.0
    %v820 = vadd.f32 %v818, %v819
    %v821 = vsel %vm787, %v289, 0.0
    %v822 = vadd.f32 %v820, %v821
    %v823 = vsel %vm787, %v297, 0.0
    %v824 = vadd.f32 %v822, %v823
    %v825 = vsel %vm787, %v305, 0.0
    %v826 = vadd.f32 %v824, %v825
    %v827 = vsel %vm787, %v313, 0.0
    %v828 = vadd.f32 %v826, %v827
    %v829 = vsel %vm787, %v321, 0.0
    %v830 = vadd.f32 %v828, %v829
    %v831 = vsel %vm787, %v329, 0.0
    %v832 = vadd.f32 %v830, %v831
    %v833 = vsel %vm787, %v337, 0.0
    %v834 = vadd.f32 %v832, %v833
    %v835 = vsel %vm787, %v345, 0.0
    %v836 = vadd.f32 %v834, %v835
    %v837 = vsel %vm787, %v353, 0.0
    %v838 = vadd.f32 %v836, %v837
    %v839 = vsel %vm787, %v361, 0.0
    %v840 = vadd.f32 %v838, %v839
    %v841 = vsel %vm787, %v369, 0.0
    %v842 = vadd.f32 %v840, %v841
    %v843 = vsel %vm787, %v377, 0.0
    %v844 = vadd.f32 %v842, %v843
    %v845 = vsel %vm787, %v385, 0.0
    %v846 = vadd.f32 %v844, %v845
    %v847 = vsel %vm787, %v393, 0.0
    %v848 = vadd.f32 %v846, %v847
    %v849 = vsel %vm787, %v401, 0.0
    %v850 = vadd.f32 %v848, %v849
    %v851 = vsel %vm787, %v409, 0.0
    %v852 = vadd.f32 %v850, %v851
    %v853 = vsel %vm787, %v417, 0.0
    %v854 = vadd.f32 %v852, %v853
    %v855 = vsel %vm787, %v425, 0.0
    %v856 = vadd.f32 %v854, %v855
    %v857 = vsel %vm787, %v433, 0.0
    %v858 = vadd.f32 %v856, %v857
    %v859 = vsel %vm787, %v441, 0.0
    %v860 = vadd.f32 %v858, %v859
    %v861 = vsel %vm787, %v449, 0.0
    %v862 = vadd.f32 %v860, %v861
    %v863 = vsel %vm787, %v457, 0.0
    %v864 = vadd.f32 %v862, %v863
    %v865 = vsel %vm787, %v465, 0.0
    %v866 = vadd.f32 %v864, %v865
    %v867 = vsel %vm787, %v473, 0.0
    %v868 = vadd.f32 %v866, %v867
    %v869 = vsel %vm787, %v481, 0.0
    %v870 = vadd.f32 %v868, %v869
    %v871 = vsel %vm787, %v489, 0.0
    %v872 = vadd.f32 %v870, %v871
    %v873 = vsel %vm787, %v497, 0.0
    %v874 = vadd.f32 %v872, %v873
    %v875 = vsel %vm787, %v505, 0.0
    %v876 = vadd.f32 %v874, %v875
    %v877 = vsel %vm787, %v513, 0.0
    %v878 = vadd.f32 %v876, %v877
    %v879 = vsel %vm787, %v521, 0.0
    %v880 = vadd.f32 %v878, %v879
    %v881 = vsel %vm787, %v529, 0.0
    %v882 = vadd.f32 %v880, %v881
    %v883 = vsel %vm787, %v537, 0.0
    %v884 = vadd.f32 %v882, %v883
    %v885 = vsel %vm787, %v545, 0.0
    %v886 = vadd.f32 %v884, %v885
    %v887 = vsel %vm787, %v553, 0.0
    %v888 = vadd.f32 %v886, %v887
    %v889 = vsel %vm787, %v561, 0.0
    %v890 = vadd.f32 %v888, %v889
    %v891 = vsel %vm787, %v569, 0.0
    %v892 = vadd.f32 %v890, %v891
    %v893 = vsel %vm787, %v577, 0.0
    %v894 = vadd.f32 %v892, %v893
    %v895 = vsel %vm787, %v585, 0.0
    %v896 = vadd.f32 %v894, %v895
    %v897 = vsel %vm787, %v593, 0.0
    %v898 = vadd.f32 %v896, %v897
    %v899 = vsel %vm787, %v601, 0.0
    %v900 = vadd.f32 %v898, %v899
    %v901 = vsel %vm787, %v609, 0.0
    %v902 = vadd.f32 %v900, %v901
    %v903 = vsel %vm787, %v617, 0.0
    %v904 = vadd.f32 %v902, %v903
    %v905 = vsel %vm787, %v625, 0.0
    %v906 = vadd.f32 %v904, %v905
    %v907 = vsel %vm787, %v633, 0.0
    %v908 = vadd.f32 %v906, %v907
    %v909 = vsel %vm787, %v641, 0.0
    %v910 = vadd.f32 %v908, %v909
    %v911 = vsel %vm787, %v649, 0.0
    %v912 = vadd.f32 %v910, %v911
    %v913 = vsel %vm787, %v657, 0.0
    %v914 = vadd.f32 %v912, %v913
    %v915 = vsel %vm787, %v154, 0.0
    %v916 = vsel %vm787, %v162, 0.0
    %v917 = vadd.f32 %v915, %v916
    %v918 = vsel %vm787, %v170, 0.0
    %v919 = vadd.f32 %v917, %v918
    %v920 = vsel %vm787, %v178, 0.0
    %v921 = vadd.f32 %v919, %v920
    %v922 = vsel %vm787, %v186, 0.0
    %v923 = vadd.f32 %v921, %v922
    %v924 = vsel %vm787, %v194, 0.0
    %v925 = vadd.f32 %v923, %v924
    %v926 = vsel %vm787, %v202, 0.0
    %v927 = vadd.f32 %v925, %v926
    %v928 = vsel %vm787, %v210, 0.0
    %v929 = vadd.f32 %v927, %v928
    %v930 = vsel %vm787, %v218, 0.0
    %v931 = vadd.f32 %v929, %v930
    %v932 = vsel %vm787, %v226, 0.0
    %v933 = vadd.f32 %v931, %v932
    %v934 = vsel %vm787, %v234, 0.0
    %v935 = vadd.f32 %v933, %v934
    %v936 = vsel %vm787, %v242, 0.0
    %v937 = vadd.f32 %v935, %v936
    %v938 = vsel %vm787, %v250, 0.0
    %v939 = vadd.f32 %v937, %v938
    %v940 = vsel %vm787, %v258, 0.0
    %v941 = vadd.f32 %v939, %v940
    %v942 = vsel %vm787, %v266, 0.0
    %v943 = vadd.f32 %v941, %v942
    %v944 = vsel %vm787, %v274, 0.0
    %v945 = vadd.f32 %v943, %v944
    %v946 = vsel %vm787, %v282, 0.0
    %v947 = vadd.f32 %v945, %v946
    %v948 = vsel %vm787, %v290, 0.0
    %v949 = vadd.f32 %v947, %v948
    %v950 = vsel %vm787, %v298, 0.0
    %v951 = vadd.f32 %v949, %v950
    %v952 = vsel %vm787, %v306, 0.0
    %v953 = vadd.f32 %v951, %v952
    %v954 = vsel %vm787, %v314, 0.0
    %v955 = vadd.f32 %v953, %v954
    %v956 = vsel %vm787, %v322, 0.0
    %v957 = vadd.f32 %v955, %v956
    %v958 = vsel %vm787, %v330, 0.0
    %v959 = vadd.f32 %v957, %v958
    %v960 = vsel %vm787, %v338, 0.0
    %v961 = vadd.f32 %v959, %v960
    %v962 = vsel %vm787, %v346, 0.0
    %v963 = vadd.f32 %v961, %v962
    %v964 = vsel %vm787, %v354, 0.0
    %v965 = vadd.f32 %v963, %v964
    %v966 = vsel %vm787, %v362, 0.0
    %v967 = vadd.f32 %v965, %v966
    %v968 = vsel %vm787, %v370, 0.0
    %v969 = vadd.f32 %v967, %v968
    %v970 = vsel %vm787, %v378, 0.0
    %v971 = vadd.f32 %v969, %v970
    %v972 = vsel %vm787, %v386, 0.0
    %v973 = vadd.f32 %v971, %v972
    %v974 = vsel %vm787, %v394, 0.0
    %v975 = vadd.f32 %v973, %v974
    %v976 = vsel %vm787, %v402, 0.0
    %v977 = vadd.f32 %v975, %v976
    %v978 = vsel %vm787, %v410, 0.0
    %v979 = vadd.f32 %v977, %v978
    %v980 = vsel %vm787, %v418, 0.0
    %v981 = vadd.f32 %v979, %v980
    %v982 = vsel %vm787, %v426, 0.0
    %v983 = vadd.f32 %v981, %v982
    %v984 = vsel %vm787, %v434, 0.0
    %v985 = vadd.f32 %v983, %v984
    %v986 = vsel %vm787, %v442, 0.0
    %v987 = vadd.f32 %v985, %v986
    %v988 = vsel %vm787, %v450, 0.0
    %v989 = vadd.f32 %v987, %v988
    %v990 = vsel %vm787, %v458, 0.0
    %v991 = vadd.f32 %v989, %v990
    %v992 = vsel %vm787, %v466, 0.0
    %v993 = vadd.f32 %v991, %v992
    %v994 = vsel %vm787, %v474, 0.0
    %v995 = vadd.f32 %v993, %v994
    %v996 = vsel %vm787, %v482, 0.0
    %v997 = vadd.f32 %v995, %v996
    %v998 = vsel %vm787, %v490, 0.0
    %v999 = vadd.f32 %v997, %v998
    %v1000 = vsel %vm787, %v498, 0.0
    %v1001 = vadd.f32 %v999, %v1000
    %v1002 = vsel %vm787, %v506, 0.0
    %v1003 = vadd.f32 %v1001, %v1002
    %v1004 = vsel %vm787, %v514, 0.0
    %v1005 = vadd.f32 %v1003, %v1004
    %v1006 = vsel %vm787, %v522, 0.0
    %v1007 = vadd.f32 %v1005, %v1006
    %v1008 = vsel %vm787, %v530, 0.0
    %v1009 = vadd.f32 %v1007, %v1008
    %v1010 = vsel %vm787, %v538, 0.0
    %v1011 = vadd.f32 %v1009, %v1010
    %v1012 = vsel %vm787, %v546, 0.0
    %v1013 = vadd.f32 %v1011, %v1012
    %v1014 = vsel %vm787, %v554, 0.0
    %v1015 = vadd.f32 %v1013, %v1014
    %v1016 = vsel %vm787, %v562, 0.0
    %v1017 = vadd.f32 %v1015, %v1016
    %v1018 = vsel %vm787, %v570, 0.0
    %v1019 = vadd.f32 %v1017, %v1018
    %v1020 = vsel %vm787, %v578, 0.0
    %v1021 = vadd.f32 %v1019, %v1020
    %v1022 = vsel %vm787, %v586, 0.0
    %v1023 = vadd.f32 %v1021, %v1022
    %v1024 = vsel %vm787, %v594, 0.0
    %v1025 = vadd.f32 %v1023, %v1024
    %v1026 = vsel %vm787, %v602, 0.0
    %v1027 = vadd.f32 %v1025, %v1026
    %v1028 = vsel %vm787, %v610, 0.0
    %v1029 = vadd.f32 %v1027, %v1028
    %v1030 = vsel %vm787, %v618, 0.0
    %v1031 = vadd.f32 %v1029, %v1030
    %v1032 = vsel %vm787, %v626, 0.0
    %v1033 = vadd.f32 %v1031, %v1032
    %v1034 = vsel %vm787, %v634, 0.0
    %v1035 = vadd.f32 %v1033, %v1034
    %v1036 = vsel %vm787, %v642, 0.0
    %v1037 = vadd.f32 %v1035, %v1036
    %v1038 = vsel %vm787, %v650, 0.0
    %v1039 = vadd.f32 %v1037, %v1038
    %v1040 = vsel %vm787, %v658, 0.0
    %v1041 = vadd.f32 %v1039, %v1040
    %v1042 = vrcp.pop 64.0
    %v1043 = vmul.f32 %v914, %v1042
    %v1044 = vmul.f32 %v1041, %v1042
    %v1045 = vld [vmem:[%s2] sm:$0xff]
    %v1046 = vld [vmem:[%s2 + $0x8] sm:$0xff]
    %v1047 = vld [vmem:[%s2 + $0x10] sm:$0xff]
    %v1048 = vld [vmem:[%s2 + $0x18] sm:$0xff]
    %v1049 = vld [vmem:[%s2 + $0x20] sm:$0xff]
    %v1050 = vld [vmem:[%s2 + $0x28] sm:$0xff]
    %v1051 = vld [vmem:[%s2 + $0x30] sm:$0xff]
    %v1052 = vld [vmem:[%s2 + $0x38] sm:$0xff]
    %v1053 = vld [vmem:[%s2 + $0x40] sm:$0xff]
    %v1054 = vld [vmem:[%s2 + $0x48] sm:$0xff]
    %v1055 = vld [vmem:[%s2 + $0x50] sm:$0xff]
    %v1056 = vld [vmem:[%s2 + $0x58] sm:$0xff]
    %v1057 = vld [vmem:[%s2 + $0x60] sm:$0xff]
    %v1058 = vld [vmem:[%s2 + $0x68] sm:$0xff]
    %v1059 = vld [vmem:[%s2 + $0x70] sm:$0xff]
    %v1060 = vld [vmem:[%s2 + $0x78] sm:$0xff]
    %v1061 = vld [vmem:[%s2 + $0x80] sm:$0xff]
    %v1062 = vld [vmem:[%s2 + $0x88] sm:$0xff]
    %v1063 = vld [vmem:[%s2 + $0x90] sm:$0xff]
    %v1064 = vld [vmem:[%s2 + $0x98] sm:$0xff]
    %v1065 = vld [vmem:[%s2 + $0xa0] sm:$0xff]
    %v1066 = vld [vmem:[%s2 + $0xa8] sm:$0xff]
    %v1067 = vld [vmem:[%s2 + $0xb0] sm:$0xff]
    %v1068 = vld [vmem:[%s2 + $0xb8] sm:$0xff]
    %v1069 = vld [vmem:[%s2 + $0xc0] sm:$0xff]
    %v1070 = vld [vmem:[%s2 + $0xc8] sm:$0xff]
    %v1071 = vld [vmem:[%s2 + $0xd0] sm:$0xff]
    %v1072 = vld [vmem:[%s2 + $0xd8] sm:$0xff]
    %v1073 = vld [vmem:[%s2 + $0xe0] sm:$0xff]
    %v1074 = vld [vmem:[%s2 + $0xe8] sm:$0xff]
    %v1075 = vld [vmem:[%s2 + $0xf0] sm:$0xff]
    %v1076 = vld [vmem:[%s2 + $0xf8] sm:$0xff]
    %1077 = vmatprep.subr.mxu0 0.0
    %1078 = vmatpush1.msra.mxu0 %v1060
    %1079 = vmatprep.subr.mxu0 0.0
    %1080 = vmatpush1.msra.mxu0 %v1059
    %1081 = vmatprep.subr.mxu0 0.0
    %1082 = vmatpush1.msra.mxu0 %v1058
    %1083 = vmatprep.subr.mxu0 0.0
    %1084 = vmatpush1.msra.mxu0 %v1057
    %1085 = vmatprep.subr.mxu0 0.0
    %1086 = vmatpush1.msra.mxu0 %v1056
    %1087 = vmatprep.subr.mxu0 0.0
    %1088 = vmatpush1.msra.mxu0 %v1055
    %1089 = vmatprep.subr.mxu0 0.0
    %1090 = vmatpush1.msra.mxu0 %v1054
    %1091 = vmatprep.subr.mxu0 0.0
    %1092 = vmatpush1.msra.mxu0 %v1053
    %1093 = vmatprep.subr.mxu0 0.0
    %1094 = vmatpush1.msra.mxu0 %v1052
    %1095 = vmatprep.subr.mxu0 0.0
    %1096 = vmatpush1.msra.mxu0 %v1051
    %1097 = vmatprep.subr.mxu0 0.0
    %1098 = vmatpush1.msra.mxu0 %v1050
    %1099 = vmatprep.subr.mxu0 0.0
    %1100 = vmatpush1.msra.mxu0 %v1049
    %1101 = vmatprep.subr.mxu0 0.0
    %1102 = vmatpush1.msra.mxu0 %v1048
    %1103 = vmatprep.subr.mxu0 0.0
    %1104 = vmatpush1.msra.mxu0 %v1047
    %1105 = vmatprep.subr.mxu0 0.0
    %1106 = vmatpush1.msra.mxu0 %v1046
    %1107 = vmatprep.subr.mxu0 0.0
    %1108 = vmatpush1.msra.mxu0 %v1045
    %1109 = vmatprep.subr.mxu0 0.0
    %1110 = vmatpush2.msra.mxu0 %v1076
    %1111 = vmatprep.subr.mxu0 0.0
    %1112 = vmatpush2.msra.mxu0 %v1075
    %1113 = vmatprep.subr.mxu0 0.0
    %1114 = vmatpush2.msra.mxu0 %v1074
    %1115 = vmatprep.subr.mxu0 0.0
    %1116 = vmatpush2.msra.mxu0 %v1073
    %1117 = vmatprep.subr.mxu0 0.0
    %1118 = vmatpush2.msra.mxu0 %v1072
    %1119 = vmatprep.subr.mxu0 0.0
    %1120 = vmatpush2.msra.mxu0 %v1071
    %1121 = vmatprep.subr.mxu0 0.0
    %1122 = vmatpush2.msra.mxu0 %v1070
    %1123 = vmatprep.subr.mxu0 0.0
    %1124 = vmatpush2.msra.mxu0 %v1069
    %1125 = vmatprep.subr.mxu0 0.0
    %1126 = vmatpush2.msra.mxu0 %v1068
    %1127 = vmatprep.subr.mxu0 0.0
    %1128 = vmatpush2.msra.mxu0 %v1067
    %1129 = vmatprep.subr.mxu0 0.0
    %1130 = vmatpush2.msra.mxu0 %v1066
    %1131 = vmatprep.subr.mxu0 0.0
    %1132 = vmatpush2.msra.mxu0 %v1065
    %1133 = vmatprep.subr.mxu0 0.0
    %1134 = vmatpush2.msra.mxu0 %v1064
    %1135 = vmatprep.subr.mxu0 0.0
    %1136 = vmatpush2.msra.mxu0 %v1063
    %1137 = vmatprep.subr.mxu0 0.0
    %1138 = vmatpush2.msra.mxu0 %v1062
    %1139 = vmatprep.subr.mxu0 0.0
    %1140 = vmatpush2.msra.mxu0 %v1061
    %1141 = vmatprep.mubr.f32.mxu0 %v1044
    %1142 = vmatmul.mubr.f32.gmra.mxu0 %v1043
    %v1143 = vpop.f32.mrf.mxu0
    %v1144 = vadd.f32 0.0, %v1143
    %v1145 = vpop.f32.mrf.mxu0
    %1146 = vdwg.mxu0
    %v1147 = vmax.f32 %v1144, 0.0
    %v1148 = vld [vmem:[%s3] sm:$0xff]
    %v1149 = vld [vmem:[%s3 + $0x8] sm:$0xff]
    %v1150 = vld [vmem:[%s3 + $0x10] sm:$0xff]
    %v1151 = vld [vmem:[%s3 + $0x18] sm:$0xff]
    %v1152 = vld [vmem:[%s3 + $0x20] sm:$0xff]
    %v1153 = vld [vmem:[%s3 + $0x28] sm:$0xff]
    %v1154 = vld [vmem:[%s3 + $0x30] sm:$0xff]
    %v1155 = vld [vmem:[%s3 + $0x38] sm:$0xff]
    %vm1156 = vcmask 261120
    %v1158 = vsel %vm1156, %v1147, 0
    %1160 = vmatprep.subr.mxu0 0.0
    %1161 = vmatpush1.msra.mxu0 0.0
    %1162 = vmatprep.subr.mxu0 0.0
    %1163 = vmatpush1.msra.mxu0 0.0
    %1164 = vmatprep.subr.mxu0 0.0
    %1165 = vmatpush1.msra.mxu0 0.0
    %1166 = vmatprep.subr.mxu0 0.0
    %1167 = vmatpush1.msra.mxu0 0.0
    %1168 = vmatprep.subr.mxu0 0.0
    %1169 = vmatpush1.msra.mxu0 0.0
    %1170 = vmatprep.subr.mxu0 0.0
    %1171 = vmatpush1.msra.mxu0 0.0
    %1172 = vmatprep.subr.mxu0 0.0
    %1173 = vmatpush1.msra.mxu0 0.0
    %1174 = vmatprep.subr.mxu0 0.0
    %1175 = vmatpush1.msra.mxu0 0.0
    %1176 = vmatprep.subr.mxu0 0.0
    %1177 = vmatpush1.msra.mxu0 0.0
    %1178 = vmatprep.subr.mxu0 0.0
    %1179 = vmatpush1.msra.mxu0 0.0
    %1180 = vmatprep.subr.mxu0 0.0
    %1181 = vmatpush1.msra.mxu0 0.0
    %1182 = vmatprep.subr.mxu0 0.0
    %1183 = vmatpush1.msra.mxu0 0.0
    %1184 = vmatprep.subr.mxu0 %v1155
    %1185 = vmatpush1.msra.mxu0 %v1154
    %1186 = vmatprep.subr.mxu0 %v1153
    %1187 = vmatpush1.msra.mxu0 %v1152
    %1188 = vmatprep.subr.mxu0 %v1151
    %1189 = vmatpush1.msra.mxu0 %v1150
    %1190 = vmatprep.subr.mxu0 %v1149
    %1191 = vmatpush1.msra.mxu0 %v1148
    %1192 = vmatprep.subr.mxu0 0.0
    %1193 = vmatpush2.msra.mxu0 0.0
    %1194 = vmatprep.subr.mxu0 0.0
    %1195 = vmatpush2.msra.mxu0 0.0
    %1196 = vmatprep.subr.mxu0 0.0
    %1197 = vmatpush2.msra.mxu0 0.0
    %1198 = vmatprep.subr.mxu0 0.0
    %1199 = vmatpush2.msra.mxu0 0.0
    %1200 = vmatprep.subr.mxu0 0.0
    %1201 = vmatpush2.msra.mxu0 0.0
    %1202 = vmatprep.subr.mxu0 0.0
    %1203 = vmatpush2.msra.mxu0 0.0
    %1204 = vmatprep.subr.mxu0 0.0
    %1205 = vmatpush2.msra.mxu0 0.0
    %1206 = vmatprep.subr.mxu0 0.0
    %1207 = vmatpush2.msra.mxu0 0.0
    %1208 = vmatprep.subr.mxu0 0.0
    %1209 = vmatpush2.msra.mxu0 0.0
    %1210 = vmatprep.subr.mxu0 0.0
    %1211 = vmatpush2.msra.mxu0 0.0
    %1212 = vmatprep.subr.mxu0 0.0
    %1213 = vmatpush2.msra.mxu0 0.0
    %1214 = vmatprep.subr.mxu0 0.0
    %1215 = vmatpush2.msra.mxu0 0.0
    %1216 = vmatprep.subr.mxu0 0.0
    %1217 = vmatpush2.msra.mxu0 0.0
    %1218 = vmatprep.subr.mxu0 0.0
    %1219 = vmatpush2.msra.mxu0 0.0
    %1220 = vmatprep.subr.mxu0 0.0
    %1221 = vmatpush2.msra.mxu0 0.0
    %1222 = vmatprep.subr.mxu0 0.0
    %1223 = vmatpush2.msra.mxu0 0.0
    %1224 = vmatprep.mubr.f32.mxu0 0.0
    %1225 = vmatmul.mubr.f32.gmra.mxu0 %v1158
    %v1226 = vpop.f32.mrf.mxu0
    %v1227 = vadd.f32 0.0, %v1226
    %v1228 = vpop.f32.mrf.mxu0
    %v1229 = vadd.f32 0.0, %v1228
    %1230 = vdwg.mxu0
    %s1231 = sld [smem:[#allocation2]]
    %v1232 = vstv %s1231
    %v1233 = vmul.f32 %v1232, %v1227
    %v1234 = vmul.f32 %v1232, %v1229
    %v1235 = vadd.f32 %v1233, 1.0
    %v1236 = vadd.f32 %v1234, 1.0
    %1237 = vst [vmem:[#allocation3] sm:$0x3] %v1235
    %1238 = vst [vmem:[#allocation3 + $0x8] sm:$0x3] %v1236
    %v1241 = vrot.slane %v1235, 6
    %v1242 = vrot.slane %v1236, 6
    %1245 = vst [vmem:[#allocation3] sm:$0xc] %v1241
    %1246 = vst [vmem:[#allocation3 + $0x8] sm:$0xc] %v1242
    %v1247 = vrot.slane %v1235, 4
    %v1248 = vrot.slane %v1236, 4
    %1251 = vst [vmem:[#allocation3] sm:$0x30] %v1247
    %1252 = vst [vmem:[#allocation3 + $0x8] sm:$0x30] %v1248
    %v1253 = vrot.slane %v1235, 2
    %v1254 = vrot.slane %v1236, 2
    %1257 = vst [vmem:[#allocation3] sm:$0xc0] %v1253
    %1258 = vst [vmem:[#allocation3 + $0x8] sm:$0xc0] %v1254
    // Predicated region
    $region18: #{tpu_custom_call.1} parent=1 // pred_check
      _
    $region19: #{tpu_custom_call.1} parent=1 // pred_check_branch
      %1260 = sbr.rel (0) target = $region21
    $region20: #{tpu_custom_call.1} parent=1 // pred_region
      %s1262 = ssub.s32 256, 256
      %1263 = vsyncadd [#allocation4], %s1262
      %s1265 = sshll.u32 [#allocation3], 4
      %s1266 = int_to_ptr.vmem [resolvable:$true] %s1265
      %1268 = dma.vmem_to_hbm [thread:$0]  %s1266, 256, %s4, [#allocation4]
    $region21: #{tpu_custom_call.1} parent=1 // pred_fallthru
      _
    // Predicated region
    $region22: #{tpu_custom_call.1} parent=1 // pred_check
      _
    $region23: #{tpu_custom_call.1} parent=1 // pred_check_branch
      %1270 = sbr.rel (0) target = $region25
    $region24: #{tpu_custom_call.1} parent=1 // pred_region
      %1271 = dma.done [#allocation4], 256
    $region25: #{tpu_custom_call.1} parent=1 // pred_fallthru
      _
    %1272 = vsyncpa [#allocation4], 1

</llo_original>
